<compile_context>
chip_gen: v7x
topology: tpu7x:2x2x1
jax: 0.10.0
libtpu: 0.0.40
codegen_flags: <defaults>
</compile_context>

<pallas_src>
import functools

import jax
import jax.numpy as jnp
from jax.experimental import pallas as pl
from jax.experimental.pallas import tpu as pltpu

# --- module hyper-parameters (the original file defines these as globals) ---
ACTION_SPACE_SIZE = 6          # embedding table has ACTION_SPACE_SIZE + 1 rows
HIDDEN_SIZE = 32               # embedding_dim
PADDING_IDX = ACTION_SPACE_SIZE


def _mdp_embedding_kernel(state_ref, act_ref, table_ref, out_ref, *, T, H, A1):
    """One grid step == one B-tile; the whole sequence is assembled in regs.

    state_ref : [bt, S*H] f32   lane-concatenated even-position state features
    act_ref   : [bt, Ta]  i32   odd-position action ids
    table_ref : [A1_pad, H] f32 embedding table (rows >= A1 are zero padding)
    out_ref   : [bt, T*H] f32   lane-dense interleaved output slab
    """
    bt = out_ref.shape[0]
    tbl = table_ref[...]                                     # [A1_pad, H]

    pieces = []
    for t in range(T):
        i = t // 2
        if t % 2 == 0:
            # state position: pass features through.
            pieces.append(state_ref[:, i * H:(i + 1) * H])   # [bt, H]
        else:
            # action position: gather = VPU select-accumulate over A1 rows.
            a_i = act_ref[:, i:i + 1]                        # [bt, 1] i32
            emb = jnp.zeros((bt, H), jnp.float32)
            for row in range(A1):
                emb = jnp.where(a_i == row, tbl[row:row + 1, :], emb)
            pieces.append(emb)                               # [bt, H]

    # Single lane-dense store of the interleaved [bt, T*H] slab.
    out_ref[...] = jnp.concatenate(pieces, axis=1).astype(out_ref.dtype)


def mdp_embedding_forward(inputs, table):
    """inputs: python list alternating [B,H] f32 states and [B,1] i32 actions.
    table: [ACTION_SPACE_SIZE + 1, H] f32 embedding weights (row PADDING_IDX == 0).
    Returns [B, T, H] f32, matching torch.cat(..., dim=1)."""
    T = len(inputs)
    B, H = inputs[0].shape
    A1 = table.shape[0]
    Ta = T // 2

    # Lane-dense wrapper-side packing (pure layout plumbing, no transposes).
    states_cat = jnp.concatenate(
        [x.astype(jnp.float32) for x in inputs[0::2]], axis=1)       # [B, S*H]
    if Ta > 0:
        acts_cat = jnp.concatenate(
            [a.reshape(B, 1).astype(jnp.int32) for a in inputs[1::2]],
            axis=1)                                                  # [B, Ta]
    else:
        acts_cat = jnp.zeros((B, 1), jnp.int32)                      # dummy, unused

    # Pad table rows up to a multiple of 8 for a clean sublane tile.
    A1_pad = ((A1 + 7) // 8) * 8
    table_pad = jnp.pad(table.astype(jnp.float32), ((0, A1_pad - A1), (0, 0)))

    # B tiling: whole batch in one step when small / non-multiple-of-8;
    # otherwise tile so the (8,128)-rule holds and the grid can shard across
    # v7x's two TensorCores.
    if B % 128 == 0:
        bt = 128
    elif B % 8 == 0:
        bt = 8
    else:
        bt = B
    grid = (B // bt,)

    kernel = functools.partial(_mdp_embedding_kernel, T=T, H=H, A1=A1)

    out_flat = pl.pallas_call(
        kernel,
        out_shape=jax.ShapeDtypeStruct((B, T * H), jnp.float32),
        grid_spec=pltpu.PrefetchScalarGridSpec(
            num_scalar_prefetch=0,
            grid=grid,
            in_specs=[
                pl.BlockSpec((bt, states_cat.shape[1]), lambda b: (b, 0)),
                pl.BlockSpec((bt, acts_cat.shape[1]), lambda b: (b, 0)),
                pl.BlockSpec((A1_pad, H), lambda b: (0, 0)),
            ],
            out_specs=pl.BlockSpec((bt, T * H), lambda b: (b, 0)),
        ),
        compiler_params=pltpu.CompilerParams(
            dimension_semantics=("parallel",)),
    )(states_cat, acts_cat, table_pad)

    # Free (row-major) reshape to the PyTorch [B, T, H] convention.
    return out_flat.reshape(B, T, H)


def _reference_forward(inputs, table):
    """Pure-JAX reference of the PyTorch forward."""
    pieces = []
    for idx, x in enumerate(inputs):
        if idx % 2 != 0:
            pieces.append(jnp.take(table, x[:, 0], axis=0)[:, None, :])
        else:
            pieces.append(x[:, None, :])
    return jnp.concatenate(pieces, axis=1)


if __name__ == "__main__":
    key = jax.random.PRNGKey(0)
    k_tab, k_states, k_acts = jax.random.split(key, 3)

    B = 2
    T = 8                      # 4 (state, action) pairs, interleaved
    H = HIDDEN_SIZE
    A1 = ACTION_SPACE_SIZE + 1

    # Deterministic "checkpoint": N(0,1) embedding weights, padding row zeroed
    # (matches nn.Embedding(..., padding_idx=ACTION_SPACE_SIZE) init).
    table = jax.random.normal(k_tab, (A1, H), dtype=jnp.float32)
    table = table.at[PADDING_IDX].set(0.0)

    state_keys = jax.random.split(k_states, T // 2)
    act_keys = jax.random.split(k_acts, T // 2)
    inputs = []
    for i in range(T // 2):
        inputs.append(jax.random.normal(state_keys[i], (B, H), dtype=jnp.float32))
        inputs.append(jax.random.randint(act_keys[i], (B, 1), 0, A1,
                                         dtype=jnp.int32))  # includes padding idx

    out = mdp_embedding_forward(inputs, table)
    out = jax.block_until_ready(out)

    ref = _reference_forward(inputs, table)
    assert out.shape == (B, T, H), out.shape
    assert jnp.allclose(out, ref, atol=1e-5, rtol=1e-5), "mismatch vs reference"

    print("KERNEL_OK")
</pallas_src>

<mosaic_0001>
module attributes {stable_mosaic.version = 11 : i64} {
  func.func @_mdp_embedding_kernel(%arg0: i32, %arg1: memref<2x128xf32, #tpu.memory_space<vmem>>, %arg2: memref<2x4xi32, #tpu.memory_space<vmem>>, %arg3: memref<8x32xf32, #tpu.memory_space<vmem>>, %arg4: memref<2x256xf32, #tpu.memory_space<vmem>>) attributes {dimension_semantics = [#tpu.dimension_semantics<parallel>], iteration_bounds = array<i64: 1>, scalar_prefetch = 0 : i64, scratch_operands = 0 : i64, tpu.core_type = #tpu.core_type<tc>, window_params = [{transform_indices = @transform_0, window_bounds = array<i64: 2, 128>}, {transform_indices = @transform_1, window_bounds = array<i64: 2, 4>}, {pipeline_mode = #tpu.pipeline_mode<synchronous>, transform_indices = @transform_2, window_bounds = array<i64: 8, 32>}, {transform_indices = @transform_3, window_bounds = array<i64: 2, 256>}]} {
    %c0 = arith.constant 0 : index
    %c0_0 = arith.constant 0 : index
    %0 = vector.load %arg3[%c0, %c0_0] : memref<8x32xf32, #tpu.memory_space<vmem>>, vector<8x32xf32>
    %c0_1 = arith.constant 0 : index
    %c0_2 = arith.constant 0 : index
    %1 = vector.load %arg1[%c0_1, %c0_2] : memref<2x128xf32, #tpu.memory_space<vmem>>, vector<2x32xf32>
    %c0_3 = arith.constant 0 : index
    %c0_4 = arith.constant 0 : index
    %2 = vector.load %arg2[%c0_3, %c0_4] : memref<2x4xi32, #tpu.memory_space<vmem>>, vector<2x1xi32>
    %cst = arith.constant 0.000000e+00 : f32
    %3 = vector.broadcast %cst : f32 to vector<2x32xf32>
    %c0_i32 = arith.constant 0 : i32
    %4 = vector.broadcast %c0_i32 : i32 to vector<2x1xi32>
    %5 = arith.cmpi eq, %2, %4 : vector<2x1xi32>
    %6 = vector.extract_strided_slice %0 {offsets = [0, 0], sizes = [1, 32], strides = [1, 1]} : vector<8x32xf32> to vector<1x32xf32>
    %7 = vector.shape_cast %5 : vector<2x1xi1> to vector<2x1xi1>
    %8 = vector.broadcast %7 : vector<2x1xi1> to vector<2x32xi1>
    %9 = vector.shape_cast %6 : vector<1x32xf32> to vector<1x32xf32>
    %10 = vector.broadcast %9 : vector<1x32xf32> to vector<2x32xf32>
    %11 = arith.select %8, %10, %3 : vector<2x32xi1>, vector<2x32xf32>
    %c1_i32 = arith.constant 1 : i32
    %12 = vector.broadcast %c1_i32 : i32 to vector<2x1xi32>
    %13 = arith.cmpi eq, %2, %12 : vector<2x1xi32>
    %14 = vector.extract_strided_slice %0 {offsets = [1, 0], sizes = [1, 32], strides = [1, 1]} : vector<8x32xf32> to vector<1x32xf32>
    %15 = vector.shape_cast %13 : vector<2x1xi1> to vector<2x1xi1>
    %16 = vector.broadcast %15 : vector<2x1xi1> to vector<2x32xi1>
    %17 = vector.shape_cast %14 : vector<1x32xf32> to vector<1x32xf32>
    %18 = vector.broadcast %17 : vector<1x32xf32> to vector<2x32xf32>
    %19 = arith.select %16, %18, %11 : vector<2x32xi1>, vector<2x32xf32>
    %c2_i32 = arith.constant 2 : i32
    %20 = vector.broadcast %c2_i32 : i32 to vector<2x1xi32>
    %21 = arith.cmpi eq, %2, %20 : vector<2x1xi32>
    %22 = vector.extract_strided_slice %0 {offsets = [2, 0], sizes = [1, 32], strides = [1, 1]} : vector<8x32xf32> to vector<1x32xf32>
    %23 = vector.shape_cast %21 : vector<2x1xi1> to vector<2x1xi1>
    %24 = vector.broadcast %23 : vector<2x1xi1> to vector<2x32xi1>
    %25 = vector.shape_cast %22 : vector<1x32xf32> to vector<1x32xf32>
    %26 = vector.broadcast %25 : vector<1x32xf32> to vector<2x32xf32>
    %27 = arith.select %24, %26, %19 : vector<2x32xi1>, vector<2x32xf32>
    %c3_i32 = arith.constant 3 : i32
    %28 = vector.broadcast %c3_i32 : i32 to vector<2x1xi32>
    %29 = arith.cmpi eq, %2, %28 : vector<2x1xi32>
    %30 = vector.extract_strided_slice %0 {offsets = [3, 0], sizes = [1, 32], strides = [1, 1]} : vector<8x32xf32> to vector<1x32xf32>
    %31 = vector.shape_cast %29 : vector<2x1xi1> to vector<2x1xi1>
    %32 = vector.broadcast %31 : vector<2x1xi1> to vector<2x32xi1>
    %33 = vector.shape_cast %30 : vector<1x32xf32> to vector<1x32xf32>
    %34 = vector.broadcast %33 : vector<1x32xf32> to vector<2x32xf32>
    %35 = arith.select %32, %34, %27 : vector<2x32xi1>, vector<2x32xf32>
    %c4_i32 = arith.constant 4 : i32
    %36 = vector.broadcast %c4_i32 : i32 to vector<2x1xi32>
    %37 = arith.cmpi eq, %2, %36 : vector<2x1xi32>
    %38 = vector.extract_strided_slice %0 {offsets = [4, 0], sizes = [1, 32], strides = [1, 1]} : vector<8x32xf32> to vector<1x32xf32>
    %39 = vector.shape_cast %37 : vector<2x1xi1> to vector<2x1xi1>
    %40 = vector.broadcast %39 : vector<2x1xi1> to vector<2x32xi1>
    %41 = vector.shape_cast %38 : vector<1x32xf32> to vector<1x32xf32>
    %42 = vector.broadcast %41 : vector<1x32xf32> to vector<2x32xf32>
    %43 = arith.select %40, %42, %35 : vector<2x32xi1>, vector<2x32xf32>
    %c5_i32 = arith.constant 5 : i32
    %44 = vector.broadcast %c5_i32 : i32 to vector<2x1xi32>
    %45 = arith.cmpi eq, %2, %44 : vector<2x1xi32>
    %46 = vector.extract_strided_slice %0 {offsets = [5, 0], sizes = [1, 32], strides = [1, 1]} : vector<8x32xf32> to vector<1x32xf32>
    %47 = vector.shape_cast %45 : vector<2x1xi1> to vector<2x1xi1>
    %48 = vector.broadcast %47 : vector<2x1xi1> to vector<2x32xi1>
    %49 = vector.shape_cast %46 : vector<1x32xf32> to vector<1x32xf32>
    %50 = vector.broadcast %49 : vector<1x32xf32> to vector<2x32xf32>
    %51 = arith.select %48, %50, %43 : vector<2x32xi1>, vector<2x32xf32>
    %c6_i32 = arith.constant 6 : i32
    %52 = vector.broadcast %c6_i32 : i32 to vector<2x1xi32>
    %53 = arith.cmpi eq, %2, %52 : vector<2x1xi32>
    %54 = vector.extract_strided_slice %0 {offsets = [6, 0], sizes = [1, 32], strides = [1, 1]} : vector<8x32xf32> to vector<1x32xf32>
    %55 = vector.shape_cast %53 : vector<2x1xi1> to vector<2x1xi1>
    %56 = vector.broadcast %55 : vector<2x1xi1> to vector<2x32xi1>
    %57 = vector.shape_cast %54 : vector<1x32xf32> to vector<1x32xf32>
    %58 = vector.broadcast %57 : vector<1x32xf32> to vector<2x32xf32>
    %59 = arith.select %56, %58, %51 : vector<2x32xi1>, vector<2x32xf32>
    %c0_5 = arith.constant 0 : index
    %c32 = arith.constant 32 : index
    %60 = vector.load %arg1[%c0_5, %c32] : memref<2x128xf32, #tpu.memory_space<vmem>>, vector<2x32xf32>
    %c0_6 = arith.constant 0 : index
    %c1 = arith.constant 1 : index
    %61 = vector.load %arg2[%c0_6, %c1] : memref<2x4xi32, #tpu.memory_space<vmem>>, vector<2x1xi32>
    %cst_7 = arith.constant 0.000000e+00 : f32
    %62 = vector.broadcast %cst_7 : f32 to vector<2x32xf32>
    %c0_i32_8 = arith.constant 0 : i32
    %63 = vector.broadcast %c0_i32_8 : i32 to vector<2x1xi32>
    %64 = arith.cmpi eq, %61, %63 : vector<2x1xi32>
    %65 = vector.extract_strided_slice %0 {offsets = [0, 0], sizes = [1, 32], strides = [1, 1]} : vector<8x32xf32> to vector<1x32xf32>
    %66 = vector.shape_cast %64 : vector<2x1xi1> to vector<2x1xi1>
    %67 = vector.broadcast %66 : vector<2x1xi1> to vector<2x32xi1>
    %68 = vector.shape_cast %65 : vector<1x32xf32> to vector<1x32xf32>
    %69 = vector.broadcast %68 : vector<1x32xf32> to vector<2x32xf32>
    %70 = arith.select %67, %69, %62 : vector<2x32xi1>, vector<2x32xf32>
    %c1_i32_9 = arith.constant 1 : i32
    %71 = vector.broadcast %c1_i32_9 : i32 to vector<2x1xi32>
    %72 = arith.cmpi eq, %61, %71 : vector<2x1xi32>
    %73 = vector.extract_strided_slice %0 {offsets = [1, 0], sizes = [1, 32], strides = [1, 1]} : vector<8x32xf32> to vector<1x32xf32>
    %74 = vector.shape_cast %72 : vector<2x1xi1> to vector<2x1xi1>
    %75 = vector.broadcast %74 : vector<2x1xi1> to vector<2x32xi1>
    %76 = vector.shape_cast %73 : vector<1x32xf32> to vector<1x32xf32>
    %77 = vector.broadcast %76 : vector<1x32xf32> to vector<2x32xf32>
    %78 = arith.select %75, %77, %70 : vector<2x32xi1>, vector<2x32xf32>
    %c2_i32_10 = arith.constant 2 : i32
    %79 = vector.broadcast %c2_i32_10 : i32 to vector<2x1xi32>
    %80 = arith.cmpi eq, %61, %79 : vector<2x1xi32>
    %81 = vector.extract_strided_slice %0 {offsets = [2, 0], sizes = [1, 32], strides = [1, 1]} : vector<8x32xf32> to vector<1x32xf32>
    %82 = vector.shape_cast %80 : vector<2x1xi1> to vector<2x1xi1>
    %83 = vector.broadcast %82 : vector<2x1xi1> to vector<2x32xi1>
    %84 = vector.shape_cast %81 : vector<1x32xf32> to vector<1x32xf32>
    %85 = vector.broadcast %84 : vector<1x32xf32> to vector<2x32xf32>
    %86 = arith.select %83, %85, %78 : vector<2x32xi1>, vector<2x32xf32>
    %c3_i32_11 = arith.constant 3 : i32
    %87 = vector.broadcast %c3_i32_11 : i32 to vector<2x1xi32>
    %88 = arith.cmpi eq, %61, %87 : vector<2x1xi32>
    %89 = vector.extract_strided_slice %0 {offsets = [3, 0], sizes = [1, 32], strides = [1, 1]} : vector<8x32xf32> to vector<1x32xf32>
    %90 = vector.shape_cast %88 : vector<2x1xi1> to vector<2x1xi1>
    %91 = vector.broadcast %90 : vector<2x1xi1> to vector<2x32xi1>
    %92 = vector.shape_cast %89 : vector<1x32xf32> to vector<1x32xf32>
    %93 = vector.broadcast %92 : vector<1x32xf32> to vector<2x32xf32>
    %94 = arith.select %91, %93, %86 : vector<2x32xi1>, vector<2x32xf32>
    %c4_i32_12 = arith.constant 4 : i32
    %95 = vector.broadcast %c4_i32_12 : i32 to vector<2x1xi32>
    %96 = arith.cmpi eq, %61, %95 : vector<2x1xi32>
    %97 = vector.extract_strided_slice %0 {offsets = [4, 0], sizes = [1, 32], strides = [1, 1]} : vector<8x32xf32> to vector<1x32xf32>
    %98 = vector.shape_cast %96 : vector<2x1xi1> to vector<2x1xi1>
    %99 = vector.broadcast %98 : vector<2x1xi1> to vector<2x32xi1>
    %100 = vector.shape_cast %97 : vector<1x32xf32> to vector<1x32xf32>
    %101 = vector.broadcast %100 : vector<1x32xf32> to vector<2x32xf32>
    %102 = arith.select %99, %101, %94 : vector<2x32xi1>, vector<2x32xf32>
    %c5_i32_13 = arith.constant 5 : i32
    %103 = vector.broadcast %c5_i32_13 : i32 to vector<2x1xi32>
    %104 = arith.cmpi eq, %61, %103 : vector<2x1xi32>
    %105 = vector.extract_strided_slice %0 {offsets = [5, 0], sizes = [1, 32], strides = [1, 1]} : vector<8x32xf32> to vector<1x32xf32>
    %106 = vector.shape_cast %104 : vector<2x1xi1> to vector<2x1xi1>
    %107 = vector.broadcast %106 : vector<2x1xi1> to vector<2x32xi1>
    %108 = vector.shape_cast %105 : vector<1x32xf32> to vector<1x32xf32>
    %109 = vector.broadcast %108 : vector<1x32xf32> to vector<2x32xf32>
    %110 = arith.select %107, %109, %102 : vector<2x32xi1>, vector<2x32xf32>
    %c6_i32_14 = arith.constant 6 : i32
    %111 = vector.broadcast %c6_i32_14 : i32 to vector<2x1xi32>
    %112 = arith.cmpi eq, %61, %111 : vector<2x1xi32>
    %113 = vector.extract_strided_slice %0 {offsets = [6, 0], sizes = [1, 32], strides = [1, 1]} : vector<8x32xf32> to vector<1x32xf32>
    %114 = vector.shape_cast %112 : vector<2x1xi1> to vector<2x1xi1>
    %115 = vector.broadcast %114 : vector<2x1xi1> to vector<2x32xi1>
    %116 = vector.shape_cast %113 : vector<1x32xf32> to vector<1x32xf32>
    %117 = vector.broadcast %116 : vector<1x32xf32> to vector<2x32xf32>
    %118 = arith.select %115, %117, %110 : vector<2x32xi1>, vector<2x32xf32>
    %c0_15 = arith.constant 0 : index
    %c64 = arith.constant 64 : index
    %119 = vector.load %arg1[%c0_15, %c64] : memref<2x128xf32, #tpu.memory_space<vmem>>, vector<2x32xf32>
    %c0_16 = arith.constant 0 : index
    %c2 = arith.constant 2 : index
    %120 = vector.load %arg2[%c0_16, %c2] : memref<2x4xi32, #tpu.memory_space<vmem>>, vector<2x1xi32>
    %cst_17 = arith.constant 0.000000e+00 : f32
    %121 = vector.broadcast %cst_17 : f32 to vector<2x32xf32>
    %c0_i32_18 = arith.constant 0 : i32
    %122 = vector.broadcast %c0_i32_18 : i32 to vector<2x1xi32>
    %123 = arith.cmpi eq, %120, %122 : vector<2x1xi32>
    %124 = vector.extract_strided_slice %0 {offsets = [0, 0], sizes = [1, 32], strides = [1, 1]} : vector<8x32xf32> to vector<1x32xf32>
    %125 = vector.shape_cast %123 : vector<2x1xi1> to vector<2x1xi1>
    %126 = vector.broadcast %125 : vector<2x1xi1> to vector<2x32xi1>
    %127 = vector.shape_cast %124 : vector<1x32xf32> to vector<1x32xf32>
    %128 = vector.broadcast %127 : vector<1x32xf32> to vector<2x32xf32>
    %129 = arith.select %126, %128, %121 : vector<2x32xi1>, vector<2x32xf32>
    %c1_i32_19 = arith.constant 1 : i32
    %130 = vector.broadcast %c1_i32_19 : i32 to vector<2x1xi32>
    %131 = arith.cmpi eq, %120, %130 : vector<2x1xi32>
    %132 = vector.extract_strided_slice %0 {offsets = [1, 0], sizes = [1, 32], strides = [1, 1]} : vector<8x32xf32> to vector<1x32xf32>
    %133 = vector.shape_cast %131 : vector<2x1xi1> to vector<2x1xi1>
    %134 = vector.broadcast %133 : vector<2x1xi1> to vector<2x32xi1>
    %135 = vector.shape_cast %132 : vector<1x32xf32> to vector<1x32xf32>
    %136 = vector.broadcast %135 : vector<1x32xf32> to vector<2x32xf32>
    %137 = arith.select %134, %136, %129 : vector<2x32xi1>, vector<2x32xf32>
    %c2_i32_20 = arith.constant 2 : i32
    %138 = vector.broadcast %c2_i32_20 : i32 to vector<2x1xi32>
    %139 = arith.cmpi eq, %120, %138 : vector<2x1xi32>
    %140 = vector.extract_strided_slice %0 {offsets = [2, 0], sizes = [1, 32], strides = [1, 1]} : vector<8x32xf32> to vector<1x32xf32>
    %141 = vector.shape_cast %139 : vector<2x1xi1> to vector<2x1xi1>
    %142 = vector.broadcast %141 : vector<2x1xi1> to vector<2x32xi1>
    %143 = vector.shape_cast %140 : vector<1x32xf32> to vector<1x32xf32>
    %144 = vector.broadcast %143 : vector<1x32xf32> to vector<2x32xf32>
    %145 = arith.select %142, %144, %137 : vector<2x32xi1>, vector<2x32xf32>
    %c3_i32_21 = arith.constant 3 : i32
    %146 = vector.broadcast %c3_i32_21 : i32 to vector<2x1xi32>
    %147 = arith.cmpi eq, %120, %146 : vector<2x1xi32>
    %148 = vector.extract_strided_slice %0 {offsets = [3, 0], sizes = [1, 32], strides = [1, 1]} : vector<8x32xf32> to vector<1x32xf32>
    %149 = vector.shape_cast %147 : vector<2x1xi1> to vector<2x1xi1>
    %150 = vector.broadcast %149 : vector<2x1xi1> to vector<2x32xi1>
    %151 = vector.shape_cast %148 : vector<1x32xf32> to vector<1x32xf32>
    %152 = vector.broadcast %151 : vector<1x32xf32> to vector<2x32xf32>
    %153 = arith.select %150, %152, %145 : vector<2x32xi1>, vector<2x32xf32>
    %c4_i32_22 = arith.constant 4 : i32
    %154 = vector.broadcast %c4_i32_22 : i32 to vector<2x1xi32>
    %155 = arith.cmpi eq, %120, %154 : vector<2x1xi32>
    %156 = vector.extract_strided_slice %0 {offsets = [4, 0], sizes = [1, 32], strides = [1, 1]} : vector<8x32xf32> to vector<1x32xf32>
    %157 = vector.shape_cast %155 : vector<2x1xi1> to vector<2x1xi1>
    %158 = vector.broadcast %157 : vector<2x1xi1> to vector<2x32xi1>
    %159 = vector.shape_cast %156 : vector<1x32xf32> to vector<1x32xf32>
    %160 = vector.broadcast %159 : vector<1x32xf32> to vector<2x32xf32>
    %161 = arith.select %158, %160, %153 : vector<2x32xi1>, vector<2x32xf32>
    %c5_i32_23 = arith.constant 5 : i32
    %162 = vector.broadcast %c5_i32_23 : i32 to vector<2x1xi32>
    %163 = arith.cmpi eq, %120, %162 : vector<2x1xi32>
    %164 = vector.extract_strided_slice %0 {offsets = [5, 0], sizes = [1, 32], strides = [1, 1]} : vector<8x32xf32> to vector<1x32xf32>
    %165 = vector.shape_cast %163 : vector<2x1xi1> to vector<2x1xi1>
    %166 = vector.broadcast %165 : vector<2x1xi1> to vector<2x32xi1>
    %167 = vector.shape_cast %164 : vector<1x32xf32> to vector<1x32xf32>
    %168 = vector.broadcast %167 : vector<1x32xf32> to vector<2x32xf32>
    %169 = arith.select %166, %168, %161 : vector<2x32xi1>, vector<2x32xf32>
    %c6_i32_24 = arith.constant 6 : i32
    %170 = vector.broadcast %c6_i32_24 : i32 to vector<2x1xi32>
    %171 = arith.cmpi eq, %120, %170 : vector<2x1xi32>
    %172 = vector.extract_strided_slice %0 {offsets = [6, 0], sizes = [1, 32], strides = [1, 1]} : vector<8x32xf32> to vector<1x32xf32>
    %173 = vector.shape_cast %171 : vector<2x1xi1> to vector<2x1xi1>
    %174 = vector.broadcast %173 : vector<2x1xi1> to vector<2x32xi1>
    %175 = vector.shape_cast %172 : vector<1x32xf32> to vector<1x32xf32>
    %176 = vector.broadcast %175 : vector<1x32xf32> to vector<2x32xf32>
    %177 = arith.select %174, %176, %169 : vector<2x32xi1>, vector<2x32xf32>
    %c0_25 = arith.constant 0 : index
    %c96 = arith.constant 96 : index
    %178 = vector.load %arg1[%c0_25, %c96] : memref<2x128xf32, #tpu.memory_space<vmem>>, vector<2x32xf32>
    %c0_26 = arith.constant 0 : index
    %c3 = arith.constant 3 : index
    %179 = vector.load %arg2[%c0_26, %c3] : memref<2x4xi32, #tpu.memory_space<vmem>>, vector<2x1xi32>
    %cst_27 = arith.constant 0.000000e+00 : f32
    %180 = vector.broadcast %cst_27 : f32 to vector<2x32xf32>
    %c0_i32_28 = arith.constant 0 : i32
    %181 = vector.broadcast %c0_i32_28 : i32 to vector<2x1xi32>
    %182 = arith.cmpi eq, %179, %181 : vector<2x1xi32>
    %183 = vector.extract_strided_slice %0 {offsets = [0, 0], sizes = [1, 32], strides = [1, 1]} : vector<8x32xf32> to vector<1x32xf32>
    %184 = vector.shape_cast %182 : vector<2x1xi1> to vector<2x1xi1>
    %185 = vector.broadcast %184 : vector<2x1xi1> to vector<2x32xi1>
    %186 = vector.shape_cast %183 : vector<1x32xf32> to vector<1x32xf32>
    %187 = vector.broadcast %186 : vector<1x32xf32> to vector<2x32xf32>
    %188 = arith.select %185, %187, %180 : vector<2x32xi1>, vector<2x32xf32>
    %c1_i32_29 = arith.constant 1 : i32
    %189 = vector.broadcast %c1_i32_29 : i32 to vector<2x1xi32>
    %190 = arith.cmpi eq, %179, %189 : vector<2x1xi32>
    %191 = vector.extract_strided_slice %0 {offsets = [1, 0], sizes = [1, 32], strides = [1, 1]} : vector<8x32xf32> to vector<1x32xf32>
    %192 = vector.shape_cast %190 : vector<2x1xi1> to vector<2x1xi1>
    %193 = vector.broadcast %192 : vector<2x1xi1> to vector<2x32xi1>
    %194 = vector.shape_cast %191 : vector<1x32xf32> to vector<1x32xf32>
    %195 = vector.broadcast %194 : vector<1x32xf32> to vector<2x32xf32>
    %196 = arith.select %193, %195, %188 : vector<2x32xi1>, vector<2x32xf32>
    %c2_i32_30 = arith.constant 2 : i32
    %197 = vector.broadcast %c2_i32_30 : i32 to vector<2x1xi32>
    %198 = arith.cmpi eq, %179, %197 : vector<2x1xi32>
    %199 = vector.extract_strided_slice %0 {offsets = [2, 0], sizes = [1, 32], strides = [1, 1]} : vector<8x32xf32> to vector<1x32xf32>
    %200 = vector.shape_cast %198 : vector<2x1xi1> to vector<2x1xi1>
    %201 = vector.broadcast %200 : vector<2x1xi1> to vector<2x32xi1>
    %202 = vector.shape_cast %199 : vector<1x32xf32> to vector<1x32xf32>
    %203 = vector.broadcast %202 : vector<1x32xf32> to vector<2x32xf32>
    %204 = arith.select %201, %203, %196 : vector<2x32xi1>, vector<2x32xf32>
    %c3_i32_31 = arith.constant 3 : i32
    %205 = vector.broadcast %c3_i32_31 : i32 to vector<2x1xi32>
    %206 = arith.cmpi eq, %179, %205 : vector<2x1xi32>
    %207 = vector.extract_strided_slice %0 {offsets = [3, 0], sizes = [1, 32], strides = [1, 1]} : vector<8x32xf32> to vector<1x32xf32>
    %208 = vector.shape_cast %206 : vector<2x1xi1> to vector<2x1xi1>
    %209 = vector.broadcast %208 : vector<2x1xi1> to vector<2x32xi1>
    %210 = vector.shape_cast %207 : vector<1x32xf32> to vector<1x32xf32>
    %211 = vector.broadcast %210 : vector<1x32xf32> to vector<2x32xf32>
    %212 = arith.select %209, %211, %204 : vector<2x32xi1>, vector<2x32xf32>
    %c4_i32_32 = arith.constant 4 : i32
    %213 = vector.broadcast %c4_i32_32 : i32 to vector<2x1xi32>
    %214 = arith.cmpi eq, %179, %213 : vector<2x1xi32>
    %215 = vector.extract_strided_slice %0 {offsets = [4, 0], sizes = [1, 32], strides = [1, 1]} : vector<8x32xf32> to vector<1x32xf32>
    %216 = vector.shape_cast %214 : vector<2x1xi1> to vector<2x1xi1>
    %217 = vector.broadcast %216 : vector<2x1xi1> to vector<2x32xi1>
    %218 = vector.shape_cast %215 : vector<1x32xf32> to vector<1x32xf32>
    %219 = vector.broadcast %218 : vector<1x32xf32> to vector<2x32xf32>
    %220 = arith.select %217, %219, %212 : vector<2x32xi1>, vector<2x32xf32>
    %c5_i32_33 = arith.constant 5 : i32
    %221 = vector.broadcast %c5_i32_33 : i32 to vector<2x1xi32>
    %222 = arith.cmpi eq, %179, %221 : vector<2x1xi32>
    %223 = vector.extract_strided_slice %0 {offsets = [5, 0], sizes = [1, 32], strides = [1, 1]} : vector<8x32xf32> to vector<1x32xf32>
    %224 = vector.shape_cast %222 : vector<2x1xi1> to vector<2x1xi1>
    %225 = vector.broadcast %224 : vector<2x1xi1> to vector<2x32xi1>
    %226 = vector.shape_cast %223 : vector<1x32xf32> to vector<1x32xf32>
    %227 = vector.broadcast %226 : vector<1x32xf32> to vector<2x32xf32>
    %228 = arith.select %225, %227, %220 : vector<2x32xi1>, vector<2x32xf32>
    %c6_i32_34 = arith.constant 6 : i32
    %229 = vector.broadcast %c6_i32_34 : i32 to vector<2x1xi32>
    %230 = arith.cmpi eq, %179, %229 : vector<2x1xi32>
    %231 = vector.extract_strided_slice %0 {offsets = [6, 0], sizes = [1, 32], strides = [1, 1]} : vector<8x32xf32> to vector<1x32xf32>
    %232 = vector.shape_cast %230 : vector<2x1xi1> to vector<2x1xi1>
    %233 = vector.broadcast %232 : vector<2x1xi1> to vector<2x32xi1>
    %234 = vector.shape_cast %231 : vector<1x32xf32> to vector<1x32xf32>
    %235 = vector.broadcast %234 : vector<1x32xf32> to vector<2x32xf32>
    %236 = arith.select %233, %235, %228 : vector<2x32xi1>, vector<2x32xf32>
    %237 = tpu.concatenate %1, %59, %60, %118, %119, %177, %178, %236 in 1 : vector<2x32xf32>, vector<2x32xf32>, vector<2x32xf32>, vector<2x32xf32>, vector<2x32xf32>, vector<2x32xf32>, vector<2x32xf32>, vector<2x32xf32> -> vector<2x256xf32>
    %c0_35 = arith.constant 0 : index
    %c0_36 = arith.constant 0 : index
    %238 = vector.load %arg4[%c0_35, %c0_36] : memref<2x256xf32, #tpu.memory_space<vmem>>, vector<2x256xf32>
    tpu.vector_store %arg4[%c0_35, %c0_36], %237 {strides = array<i32>} : memref<2x256xf32, #tpu.memory_space<vmem>>, vector<2x256xf32>,
    return
  }
  func.func @transform_0(%arg0: i32) -> (i32, i32) {
    %c0_i32 = arith.constant 0 : i32
    %c0_i32_0 = arith.constant 0 : i32
    return %arg0, %c0_i32 : i32, i32
  }
  func.func @transform_1(%arg0: i32) -> (i32, i32) {
    %c0_i32 = arith.constant 0 : i32
    %c0_i32_0 = arith.constant 0 : i32
    return %arg0, %c0_i32 : i32, i32
  }
  func.func @transform_2(%arg0: i32) -> (i32, i32) {
    %c0_i32 = arith.constant 0 : i32
    %c0_i32_0 = arith.constant 0 : i32
    %c0_i32_1 = arith.constant 0 : i32
    return %c0_i32, %c0_i32_0 : i32, i32
  }
  func.func @transform_3(%arg0: i32) -> (i32, i32) {
    %c0_i32 = arith.constant 0 : i32
    %c0_i32_0 = arith.constant 0 : i32
    return %arg0, %c0_i32 : i32, i32
  }
}

</mosaic_0001>

<llo_original>
// kernel: tpu_custom_call.1
$region0: #{tpu_custom_call.1}
  #allocation0 [shape = 'u32[]', space=smem, size = 0x4, offset = 0x4, fixed_abs, tag = 'smem constant byte address 0x4 - core index']
  #allocation1 [shape = 'u32[144,128]{1,0:T(1,128)}', space=vmem, size = 0x12000, scoped, tag = 'internal scratch']
  %s0 = inlined_call_operand.hbm [shape: f32[2,128], index: 0, kind: input, shape index: {}]
  %s1 = inlined_call_operand.vmem [shape: s32[2,4], index: 1, kind: input, shape index: {}]
  %s2 = inlined_call_operand.hbm [shape: f32[8,32], index: 2, kind: input, shape index: {}]
  %s3 = inlined_call_operand.hbm [shape: f32[2,256], index: 3, kind: output, shape index: {}]
  %s4 = sld [smem:[#allocation0]]
  $region30: #{tpu_custom_call.1} parent=0
    _
  %s6 = ssub.s32 1, %s4
  %s7 = scalar_select 0, %s6, %s4
  $region1: #{tpu_custom_call.1} parent=0
    #allocation2 [shape = 'u8[1024]{0}', space=vmem, size = 0x400, scoped, tag = 'input window, operand 0, single buffered']
    #allocation3 [shape = 's32[1]{0}', space=sflag, size = 0x4, scoped, tag = 'scoped memory for tpu_custom_call.1']
    #allocation4 [shape = 's32[1]{0}', space=sflag, size = 0x4, scoped, tag = 'scoped memory for tpu_custom_call.1']
    #allocation5 [shape = 'u8[4096]{0}', space=vmem, size = 0x1000, scoped, tag = 'input window, operand 2, single buffered']
    #allocation6 [shape = 's32[1]{0}', space=sflag, size = 0x4, scoped, tag = 'scoped memory for tpu_custom_call.1']
    #allocation7 [shape = 'u8[2048]{0}', space=vmem, size = 0x800, scoped, tag = 'output window, operand 0, single buffered']
    %8 = vsyncpa [#allocation3], 0
    %9 = vsyncpa [#allocation6], 0
    %10 = vsyncpa [#allocation4], 0
    // Predicated region
    $region2: #{tpu_custom_call.1} parent=1 // pred_check
      _
    $region3: #{tpu_custom_call.1} parent=1 // pred_check_branch
      %12 = sbr.rel (0) target = $region5
    $region4: #{tpu_custom_call.1} parent=1 // pred_region
      %s14 = ssub.s32 32, 32
      %15 = vsyncadd [#allocation3], %s14
      %s17 = sshll.u32 [#allocation2], 4
      %s18 = int_to_ptr.vmem [resolvable:$true] %s17
      %20 = dma.hbm_to_vmem [thread:$0]  %s0, 32, %s18, [#allocation3]
    $region5: #{tpu_custom_call.1} parent=1 // pred_fallthru
      _
    // Predicated region
    $region6: #{tpu_custom_call.1} parent=1 // pred_check
      _
    $region7: #{tpu_custom_call.1} parent=1 // pred_check_branch
      %22 = sbr.rel (0) target = $region9
    $region8: #{tpu_custom_call.1} parent=1 // pred_region
      _
    $region9: #{tpu_custom_call.1} parent=1 // pred_fallthru
      _
    // Predicated region
    $region10: #{tpu_custom_call.1} parent=1 // pred_check
      _
    $region11: #{tpu_custom_call.1} parent=1 // pred_check_branch
      %24 = sbr.rel (0) target = $region13
    $region12: #{tpu_custom_call.1} parent=1 // pred_region
      %s26 = ssub.s32 128, 128
      %27 = vsyncadd [#allocation6], %s26
      %s29 = sshll.u32 [#allocation5], 4
      %s30 = int_to_ptr.vmem [resolvable:$true] %s29
      %32 = dma.hbm_to_vmem [thread:$0]  %s2, 128, %s30, [#allocation6]
    $region13: #{tpu_custom_call.1} parent=1 // pred_fallthru
      _
    // Predicated region
    $region14: #{tpu_custom_call.1} parent=1 // pred_check
      _
    $region15: #{tpu_custom_call.1} parent=1 // pred_check_branch
      %34 = sbr.rel (0) target = $region17
    $region16: #{tpu_custom_call.1} parent=1 // pred_region
      %35 = dma.done [#allocation3], 32
    $region17: #{tpu_custom_call.1} parent=1 // pred_fallthru
      _
    // Predicated region
    $region18: #{tpu_custom_call.1} parent=1 // pred_check
      _
    $region19: #{tpu_custom_call.1} parent=1 // pred_check_branch
      %37 = sbr.rel (0) target = $region21
    $region20: #{tpu_custom_call.1} parent=1 // pred_region
      %38 = dma.done [#allocation6], 128
    $region21: #{tpu_custom_call.1} parent=1 // pred_fallthru
      _
    %v39 = vld [vmem:[#allocation5] sm:$0xff]
    %v40 = vld [vmem:[#allocation2] sm:$0x3]
    %v41 = vld [vmem:[%s1] sm:$0x3]
    %vm42 = vcmp.eq.s32.totalorder %v41, 0
    %v43 = vsel %vm42, 1, 0
    %44 = vset.pattern.permute.xlu0 0
    %45 = vperm.xlu0 %44, %v43
    %v46 = vpop.permute.xlu0 %45
    %vm47 = vcmp.eq.s32.totalorder %v46, 1
    %v48 = vlaneseq
    %v49 = vshrl.u32 %v48, 7
    %v50 = vsub.s32 0, %v49
    %v51 = vrot.slane %v39, %v50
    %v52 = vsel %vm47, %v51, 0.0
    %vm53 = vcmp.eq.s32.totalorder %v41, 1
    %v54 = vsel %vm53, 1, 0
    %55 = vset.pattern.permute.xlu0 0
    %56 = vperm.xlu0 %55, %v54
    %v57 = vpop.permute.xlu0 %56
    %vm58 = vcmp.eq.s32.totalorder %v57, 1
    %v59 = vlaneseq
    %v60 = vshrl.u32 %v59, 7
    %v61 = vsub.s32 1, %v60
    %v62 = vrot.slane %v39, %v61
    %v63 = vsel %vm58, %v62, %v52
    %vm64 = vcmp.eq.s32.totalorder %v41, 2
    %v65 = vsel %vm64, 1, 0
    %66 = vset.pattern.permute.xlu0 0
    %67 = vperm.xlu0 %66, %v65
    %v68 = vpop.permute.xlu0 %67
    %vm69 = vcmp.eq.s32.totalorder %v68, 1
    %v70 = vlaneseq
    %v71 = vshrl.u32 %v70, 7
    %v72 = vsub.s32 2, %v71
    %v73 = vrot.slane %v39, %v72
    %v74 = vsel %vm69, %v73, %v63
    %vm75 = vcmp.eq.s32.totalorder %v41, 3
    %v76 = vsel %vm75, 1, 0
    %77 = vset.pattern.permute.xlu0 0
    %78 = vperm.xlu0 %77, %v76
    %v79 = vpop.permute.xlu0 %78
    %vm80 = vcmp.eq.s32.totalorder %v79, 1
    %v81 = vlaneseq
    %v82 = vshrl.u32 %v81, 7
    %v83 = vsub.s32 3, %v82
    %v84 = vrot.slane %v39, %v83
    %v85 = vsel %vm80, %v84, %v74
    %vm86 = vcmp.eq.s32.totalorder %v41, 4
    %v87 = vsel %vm86, 1, 0
    %88 = vset.pattern.permute.xlu0 0
    %89 = vperm.xlu0 %88, %v87
    %v90 = vpop.permute.xlu0 %89
    %vm91 = vcmp.eq.s32.totalorder %v90, 1
    %v92 = vlaneseq
    %v93 = vshrl.u32 %v92, 7
    %v94 = vsub.s32 4, %v93
    %v95 = vrot.slane %v39, %v94
    %v96 = vsel %vm91, %v95, %v85
    %vm97 = vcmp.eq.s32.totalorder %v41, 5
    %v98 = vsel %vm97, 1, 0
    %99 = vset.pattern.permute.xlu0 0
    %100 = vperm.xlu0 %99, %v98
    %v101 = vpop.permute.xlu0 %100
    %vm102 = vcmp.eq.s32.totalorder %v101, 1
    %v103 = vlaneseq
    %v104 = vshrl.u32 %v103, 7
    %v105 = vsub.s32 5, %v104
    %v106 = vrot.slane %v39, %v105
    %v107 = vsel %vm102, %v106, %v96
    %vm108 = vcmp.eq.s32.totalorder %v41, 6
    %v109 = vsel %vm108, 1, 0
    %110 = vset.pattern.permute.xlu0 0
    %111 = vperm.xlu0 %110, %v109
    %v112 = vpop.permute.xlu0 %111
    %vm113 = vcmp.eq.s32.totalorder %v112, 1
    %v114 = vlaneseq
    %v115 = vshrl.u32 %v114, 7
    %v116 = vsub.s32 6, %v115
    %v117 = vrot.slane %v39, %v116
    %v118 = vsel %vm113, %v117, %v107
    %119 = vset.pattern.permute.xlu0 1
    %120 = vperm.xlu0 %119, %v43
    %v121 = vpop.permute.xlu0 %120
    %vm122 = vcmp.eq.s32.totalorder %v121, 1
    %v123 = vsel %vm122, %v51, 0.0
    %124 = vset.pattern.permute.xlu0 1
    %125 = vperm.xlu0 %124, %v54
    %v126 = vpop.permute.xlu0 %125
    %vm127 = vcmp.eq.s32.totalorder %v126, 1
    %v128 = vsel %vm127, %v62, %v123
    %129 = vset.pattern.permute.xlu0 1
    %130 = vperm.xlu0 %129, %v65
    %v131 = vpop.permute.xlu0 %130
    %vm132 = vcmp.eq.s32.totalorder %v131, 1
    %v133 = vsel %vm132, %v73, %v128
    %134 = vset.pattern.permute.xlu0 1
    %135 = vperm.xlu0 %134, %v76
    %v136 = vpop.permute.xlu0 %135
    %vm137 = vcmp.eq.s32.totalorder %v136, 1
    %v138 = vsel %vm137, %v84, %v133
    %139 = vset.pattern.permute.xlu0 1
    %140 = vperm.xlu0 %139, %v87
    %v141 = vpop.permute.xlu0 %140
    %vm142 = vcmp.eq.s32.totalorder %v141, 1
    %v143 = vsel %vm142, %v95, %v138
    %144 = vset.pattern.permute.xlu0 1
    %145 = vperm.xlu0 %144, %v98
    %v146 = vpop.permute.xlu0 %145
    %vm147 = vcmp.eq.s32.totalorder %v146, 1
    %v148 = vsel %vm147, %v106, %v143
    %149 = vset.pattern.permute.xlu0 1
    %150 = vperm.xlu0 %149, %v109
    %v151 = vpop.permute.xlu0 %150
    %vm152 = vcmp.eq.s32.totalorder %v151, 1
    %v153 = vsel %vm152, %v117, %v148
    %154 = vset.pattern.permute.xlu0 2
    %155 = vperm.xlu0 %154, %v43
    %v156 = vpop.permute.xlu0 %155
    %vm157 = vcmp.eq.s32.totalorder %v156, 1
    %v158 = vsel %vm157, %v51, 0.0
    %159 = vset.pattern.permute.xlu0 2
    %160 = vperm.xlu0 %159, %v54
    %v161 = vpop.permute.xlu0 %160
    %vm162 = vcmp.eq.s32.totalorder %v161, 1
    %v163 = vsel %vm162, %v62, %v158
    %164 = vset.pattern.permute.xlu0 2
    %165 = vperm.xlu0 %164, %v65
    %v166 = vpop.permute.xlu0 %165
    %vm167 = vcmp.eq.s32.totalorder %v166, 1
    %v168 = vsel %vm167, %v73, %v163
    %169 = vset.pattern.permute.xlu0 2
    %170 = vperm.xlu0 %169, %v76
    %v171 = vpop.permute.xlu0 %170
    %vm172 = vcmp.eq.s32.totalorder %v171, 1
    %v173 = vsel %vm172, %v84, %v168
    %174 = vset.pattern.permute.xlu0 2
    %175 = vperm.xlu0 %174, %v87
    %v176 = vpop.permute.xlu0 %175
    %vm177 = vcmp.eq.s32.totalorder %v176, 1
    %v178 = vsel %vm177, %v95, %v173
    %179 = vset.pattern.permute.xlu0 2
    %180 = vperm.xlu0 %179, %v98
    %v181 = vpop.permute.xlu0 %180
    %vm182 = vcmp.eq.s32.totalorder %v181, 1
    %v183 = vsel %vm182, %v106, %v178
    %184 = vset.pattern.permute.xlu0 2
    %185 = vperm.xlu0 %184, %v109
    %v186 = vpop.permute.xlu0 %185
    %vm187 = vcmp.eq.s32.totalorder %v186, 1
    %v188 = vsel %vm187, %v117, %v183
    %189 = vset.pattern.permute.xlu0 3
    %190 = vperm.xlu0 %189, %v43
    %v191 = vpop.permute.xlu0 %190
    %vm192 = vcmp.eq.s32.totalorder %v191, 1
    %v193 = vsel %vm192, %v51, 0.0
    %194 = vset.pattern.permute.xlu0 3
    %195 = vperm.xlu0 %194, %v54
    %v196 = vpop.permute.xlu0 %195
    %vm197 = vcmp.eq.s32.totalorder %v196, 1
    %v198 = vsel %vm197, %v62, %v193
    %199 = vset.pattern.permute.xlu0 3
    %200 = vperm.xlu0 %199, %v65
    %v201 = vpop.permute.xlu0 %200
    %vm202 = vcmp.eq.s32.totalorder %v201, 1
    %v203 = vsel %vm202, %v73, %v198
    %204 = vset.pattern.permute.xlu0 3
    %205 = vperm.xlu0 %204, %v76
    %v206 = vpop.permute.xlu0 %205
    %vm207 = vcmp.eq.s32.totalorder %v206, 1
    %v208 = vsel %vm207, %v84, %v203
    %209 = vset.pattern.permute.xlu0 3
    %210 = vperm.xlu0 %209, %v87
    %v211 = vpop.permute.xlu0 %210
    %vm212 = vcmp.eq.s32.totalorder %v211, 1
    %v213 = vsel %vm212, %v95, %v208
    %214 = vset.pattern.permute.xlu0 3
    %215 = vperm.xlu0 %214, %v98
    %v216 = vpop.permute.xlu0 %215
    %vm217 = vcmp.eq.s32.totalorder %v216, 1
    %v218 = vsel %vm217, %v106, %v213
    %219 = vset.pattern.permute.xlu0 3
    %220 = vperm.xlu0 %219, %v109
    %v221 = vpop.permute.xlu0 %220
    %vm222 = vcmp.eq.s32.totalorder %v221, 1
    %v223 = vsel %vm222, %v117, %v218
    %225 = vrot.lane.b32.xlu0 %v118, 32
    %v226 = vpop.permute.xlu0 %225
    %229 = vrot.lane.b32.xlu0 %v40, 32
    %v230 = vpop.permute.xlu0 %229
    %233 = vrot.lane.b32.xlu0 %v153, 96
    %v234 = vpop.permute.xlu0 %233
    %236 = vrot.lane.b32.xlu0 %v40, 64
    %v237 = vpop.permute.xlu0 %236
    %240 = vrot.lane.b32.xlu0 %v188, 32
    %v241 = vpop.permute.xlu0 %240
    %243 = vrot.lane.b32.xlu0 %v40, 96
    %v244 = vpop.permute.xlu0 %243
    %247 = vrot.lane.b32.xlu0 %v223, 96
    %v248 = vpop.permute.xlu0 %247
    %vm250 = vcmask 261120
    %v251 = vsel %vm250, %v40, %v226
    %vm252 = vcmask 523264
    %v253 = vsel %vm252, %v251, %v230
    %vm254 = vcmask 785408
    %v255 = vsel %vm254, %v253, %v234
    %v256 = vsel %vm250, %v237, %v241
    %v257 = vsel %vm252, %v256, %v244
    %v258 = vsel %vm254, %v257, %v248
    %v261 = vcombine.low %v255, %v258
    %v263 = vunpack.c.l.s4 1983009808
    %v264 = vunpack.c.0.s8 %v263
    %v265 = vlaneseq
    %v266 = vshrl.u32 %v265, 7
    %v267 = vsub.s32 %v264, %v266
    %v268 = vrot.slane %v261, %v267
    %270 = vst [vmem:[#allocation7] sm:$0xf] %v268
    // Predicated region
    $region22: #{tpu_custom_call.1} parent=1 // pred_check
      _
    $region23: #{tpu_custom_call.1} parent=1 // pred_check_branch
      %272 = sbr.rel (0) target = $region25
    $region24: #{tpu_custom_call.1} parent=1 // pred_region
      %s274 = ssub.s32 64, 64
      %275 = vsyncadd [#allocation4], %s274
      %s277 = sshll.u32 [#allocation7], 4
      %s278 = int_to_ptr.vmem [resolvable:$true] %s277
      %280 = dma.vmem_to_hbm [thread:$0]  %s278, 64, %s3, [#allocation4]
    $region25: #{tpu_custom_call.1} parent=1 // pred_fallthru
      _
    // Predicated region
    $region26: #{tpu_custom_call.1} parent=1 // pred_check
      _
    $region27: #{tpu_custom_call.1} parent=1 // pred_check_branch
      %282 = sbr.rel (0) target = $region29
    $region28: #{tpu_custom_call.1} parent=1 // pred_region
      %283 = dma.done [#allocation4], 64
    $region29: #{tpu_custom_call.1} parent=1 // pred_fallthru
      _
    %284 = vsyncpa [#allocation3], 1
    %285 = vsyncpa [#allocation6], 1
    %286 = vsyncpa [#allocation4], 1

</llo_original>
